<compile_context>
chip_gen: v6e
topology: v6e:2x2x1
jax: 0.10.0
libtpu: 0.0.40
codegen_flags: <defaults>
</compile_context>

<pallas_src>
import jax
import jax.numpy as jnp
from jax.experimental import pallas as pl
from jax.experimental.pallas import tpu as pltpu  # noqa: F401  (kept for TPU-specific tuning hooks)

CONTEXT_LENGTH = 16
NUM_EMBEDDINGS = 128
HEAD_SIZE = 32
DROPOUT = 0.2  # forward evaluated in eval/inference mode -> dropout is identity
# TODO(synk): training-mode dropout (p=0.2) not implemented; kernel matches eval() semantics.

LANE = 128  # TPU lane width; packed QKV weight is zero-padded to this many columns


def _attn_head_kernel(x_ref, w_ref, o_ref):
    # x_ref: (B, T, C)   whole batch
    # w_ref: (C, LANE)   packed [Wq | Wk | Wv | zero-pad]
    # o_ref: (B, T, H)
    B, T, C = x_ref.shape
    H = o_ref.shape[-1]

    # Single lane-dense projection on the MXU: (B*T, C) @ (C, 128).
    x2d = x_ref[...].reshape(B * T, C).astype(jnp.float32)
    w = w_ref[...].astype(jnp.float32)
    qkv = jnp.dot(x2d, w, preferred_element_type=jnp.float32).reshape(B, T, LANE)

    q = qkv[:, :, 0:H]
    k = qkv[:, :, H:2 * H]
    v = qkv[:, :, 2 * H:3 * H]

    scale = 1.0 / (HEAD_SIZE ** 0.5)
    # attention scores (B, T, T); batched matmul via einsum (jnp.dot is not batched)
    scores = jnp.einsum('bqd,bkd->bqk', q, k,
                        preferred_element_type=jnp.float32) * scale

    # causal mask: keep where row >= col (tril == 1), else -inf
    row = jax.lax.broadcasted_iota(jnp.int32, (T, T), 0)
    col = jax.lax.broadcasted_iota(jnp.int32, (T, T), 1)
    scores = jnp.where((row >= col)[None, :, :], scores, -jnp.inf)

    # numerically stable softmax; denominator reciprocal goes to the EUP (approx)
    m = jnp.max(scores, axis=-1, keepdims=True)
    e = jnp.exp(scores - m)
    denom = jnp.sum(e, axis=-1, keepdims=True)
    weights = e * pl.reciprocal(denom, approx=True)

    out = jnp.einsum('bqk,bkd->bqd', weights, v,
                     preferred_element_type=jnp.float32)  # (B, T, H)
    # one store for the whole batch (H=32 < 128 lanes -> single masked store)
    o_ref[...] = out.astype(o_ref.dtype)


def self_attention_head(x, wk, wq, wv):
    """x: (B, T, C); wk/wq/wv: (C, H). Returns (B, T, H). Eval-mode forward."""
    B, T, C = x.shape
    H = wk.shape[1]
    assert 3 * H <= LANE, "packed QKV must fit in one 128-lane weight block"

    # Fuse the three projection weights into one lane-dense (C, 128) matrix.
    w_qkv = jnp.concatenate([wq, wk, wv], axis=1)            # (C, 3H)
    w_qkv = jnp.pad(w_qkv, ((0, 0), (0, LANE - 3 * H)))      # (C, 128)

    flops = 2 * B * T * C * LANE + 2 * (2 * B * T * T * H)   # projection + 2 attention matmuls
    bytes_accessed = 4 * (x.size + w_qkv.size + B * T * H)
    transcendentals = B * T * T + B * T                      # exp + reciprocal

    return pl.pallas_call(
        _attn_head_kernel,
        out_shape=jax.ShapeDtypeStruct((B, T, H), x.dtype),
        # Collapsed grid: the whole (~68 KiB) problem is a single pipeline step.
        in_specs=[
            pl.BlockSpec((B, T, C), lambda: (0, 0, 0)),
            pl.BlockSpec((C, LANE), lambda: (0, 0)),
        ],
        out_specs=pl.BlockSpec((B, T, H), lambda: (0, 0, 0)),
        cost_estimate=pl.CostEstimate(
            flops=flops,
            transcendentals=transcendentals,
            bytes_accessed=bytes_accessed),
    )(x, w_qkv)


def _reference(x, wk, wq, wv):
    """Pure-JAX reference of the PyTorch forward (eval mode)."""
    k = x @ wk
    q = x @ wq
    v = x @ wv
    scores = (q @ jnp.swapaxes(k, -2, -1)) / (HEAD_SIZE ** 0.5)
    T = x.shape[1]
    tril = jnp.tril(jnp.ones((T, T)))
    scores = jnp.where(tril == 0, -jnp.inf, scores)
    weights = jax.nn.softmax(scores, axis=-1)
    return weights @ v


if __name__ == "__main__":
    key = jax.random.PRNGKey(0)
    kx, kk, kq, kv = jax.random.split(key, 4)

    B, T, C, H = 2, CONTEXT_LENGTH, NUM_EMBEDDINGS, HEAD_SIZE
    x = jax.random.normal(kx, (B, T, C), dtype=jnp.float32)

    # nn.Linear(C, H, bias=False) default init: U(-1/sqrt(C), 1/sqrt(C)),
    # stored transposed so forward is x @ W.
    bound = 1.0 / (C ** 0.5)
    wk = jax.random.uniform(kk, (C, H), jnp.float32, -bound, bound)
    wq = jax.random.uniform(kq, (C, H), jnp.float32, -bound, bound)
    wv = jax.random.uniform(kv, (C, H), jnp.float32, -bound, bound)

    out = jax.block_until_ready(self_attention_head(x, wk, wq, wv))
    ref = _reference(x, wk, wq, wv)

    assert out.shape == (B, T, H), out.shape
    # tolerance loosened slightly to cover the EUP approx-reciprocal softmax denominator
    assert jnp.allclose(out, ref, atol=2e-3, rtol=2e-3), "mismatch vs reference"
    print("KERNEL_OK")
</pallas_src>

<mosaic_0001>
module attributes {stable_mosaic.version = 11 : i64} {
  func.func @_attn_head_kernel(%arg0: memref<2x16x128xf32, #tpu.memory_space<vmem>>, %arg1: memref<128x128xf32, #tpu.memory_space<vmem>>, %arg2: memref<2x16x32xf32, #tpu.memory_space<vmem>>) attributes {dimension_semantics = [], scalar_prefetch = 0 : i64, scratch_operands = 0 : i64, tpu.core_type = #tpu.core_type<tc>} {
    %c0 = arith.constant 0 : index
    %c0_0 = arith.constant 0 : index
    %c0_1 = arith.constant 0 : index
    %0 = vector.load %arg0[%c0, %c0_0, %c0_1] : memref<2x16x128xf32, #tpu.memory_space<vmem>>, vector<2x16x128xf32>
    %1 = vector.shape_cast %0 : vector<2x16x128xf32> to vector<32x128xf32>
    %c0_2 = arith.constant 0 : index
    %c0_3 = arith.constant 0 : index
    %2 = vector.load %arg1[%c0_2, %c0_3] : memref<128x128xf32, #tpu.memory_space<vmem>>, vector<128x128xf32>
    %cst = arith.constant dense<0.000000e+00> : vector<32x128xf32>
    %3 = tpu.matmul %1, %2, %cst {dimension_numbers = #tpu.dot_dimension_numbers<[1], [0], [0], [1], [0, 0, 1, 1], [], []>} : vector<32x128xf32>, vector<128x128xf32>, vector<32x128xf32> -> vector<32x128xf32>
    %4 = vector.shape_cast %3 : vector<32x128xf32> to vector<2x16x128xf32>
    %5 = vector.extract_strided_slice %4 {offsets = [0, 0, 0], sizes = [2, 16, 32], strides = [1, 1, 1]} : vector<2x16x128xf32> to vector<2x16x32xf32>
    %6 = vector.extract_strided_slice %4 {offsets = [0, 0, 32], sizes = [2, 16, 32], strides = [1, 1, 1]} : vector<2x16x128xf32> to vector<2x16x32xf32>
    %7 = vector.extract_strided_slice %4 {offsets = [0, 0, 64], sizes = [2, 16, 32], strides = [1, 1, 1]} : vector<2x16x128xf32> to vector<2x16x32xf32>
    "tpu.trace_start"() <{level = 10 : i32, message = "bqd,bkd->bqk"}> : () -> ()
    %cst_4 = arith.constant dense<0.000000e+00> : vector<2x16x16xf32>
    %8 = tpu.matmul %5, %6, %cst_4 {dimension_numbers = #tpu.dot_dimension_numbers<[2], [2], [1], [1], [0, 0, 0, 1, 1, 1], [0], [0]>} : vector<2x16x32xf32>, vector<2x16x32xf32>, vector<2x16x16xf32> -> vector<2x16x16xf32>
    "tpu.trace_stop"() : () -> ()
    %cst_5 = arith.constant 0.176776692 : f32
    %9 = vector.broadcast %cst_5 : f32 to vector<2x16x16xf32>
    %10 = arith.mulf %8, %9 : vector<2x16x16xf32>
    %11 = tpu.iota {dimensions = array<i32: 0>} : vector<16x16xi32>
    %12 = tpu.iota {dimensions = array<i32: 1>} : vector<16x16xi32>
    %13 = arith.cmpi sge, %11, %12 : vector<16x16xi32>
    %14 = vector.shape_cast %13 : vector<16x16xi1> to vector<1x16x16xi1>
    %cst_6 = arith.constant 0xFF800000 : f32
    %15 = vector.shape_cast %14 : vector<1x16x16xi1> to vector<1x16x16xi1>
    %16 = vector.broadcast %15 : vector<1x16x16xi1> to vector<2x16x16xi1>
    %17 = vector.broadcast %cst_6 : f32 to vector<2x16x16xf32>
    %18 = arith.select %16, %10, %17 : vector<2x16x16xi1>, vector<2x16x16xf32>
    %cst_7 = arith.constant dense<0xFF800000> : vector<2x16xf32>
    %19 = vector.multi_reduction <maximumf>, %18, %cst_7 [2] : vector<2x16x16xf32> to vector<2x16xf32>
    %20 = vector.shape_cast %19 : vector<2x16xf32> to vector<2x16x1xf32>
    %21 = vector.broadcast %20 : vector<2x16x1xf32> to vector<2x16x16xf32>
    %22 = arith.subf %18, %21 : vector<2x16x16xf32>
    %23 = math.exp %22 : vector<2x16x16xf32>
    %cst_8 = arith.constant dense<0.000000e+00> : vector<2x16xf32>
    %24 = vector.multi_reduction <add>, %23, %cst_8 [2] : vector<2x16x16xf32> to vector<2x16xf32>
    %25 = vector.shape_cast %24 : vector<2x16xf32> to vector<2x16x1xf32>
    %26 = tpu.reciprocal %25 {approx = true} : vector<2x16x1xf32> -> vector<2x16x1xf32>
    %27 = vector.broadcast %26 : vector<2x16x1xf32> to vector<2x16x16xf32>
    %28 = arith.mulf %23, %27 : vector<2x16x16xf32>
    "tpu.trace_start"() <{level = 10 : i32, message = "bqk,bkd->bqd"}> : () -> ()
    %cst_9 = arith.constant dense<0.000000e+00> : vector<2x16x32xf32>
    %29 = tpu.matmul %28, %7, %cst_9 {dimension_numbers = #tpu.dot_dimension_numbers<[2], [1], [1], [2], [0, 0, 0, 1, 1, 2], [0], [0]>} : vector<2x16x16xf32>, vector<2x16x32xf32>, vector<2x16x32xf32> -> vector<2x16x32xf32>
    "tpu.trace_stop"() : () -> ()
    %c0_10 = arith.constant 0 : index
    %c0_11 = arith.constant 0 : index
    %c0_12 = arith.constant 0 : index
    %30 = vector.load %arg2[%c0_10, %c0_11, %c0_12] : memref<2x16x32xf32, #tpu.memory_space<vmem>>, vector<2x16x32xf32>
    tpu.vector_store %arg2[%c0_10, %c0_11, %c0_12], %29 {strides = array<i32>} : memref<2x16x32xf32, #tpu.memory_space<vmem>>, vector<2x16x32xf32>,
    return
  }
}

</mosaic_0001>

<llo_original>
// kernel: tpu_custom_call.1
$region0: #{tpu_custom_call.1}
  #allocation0 [shape = 'u32[]', space=smem, size = 0x4, offset = 0x4, fixed_abs, tag = 'smem constant byte address 0x4 - core index']
  #allocation1 [shape = 'u32[144,128]{1,0:T(1,128)}', space=vmem, size = 0x12000, scoped, tag = 'internal scratch']
  %s0 = inlined_call_operand.hbm [shape: f32[2,16,128], index: 0, kind: input, shape index: {}]
  %s1 = inlined_call_operand.hbm [shape: f32[128,128], index: 1, kind: input, shape index: {}]
  %s2 = inlined_call_operand.hbm [shape: f32[2,16,32], index: 2, kind: output, shape index: {}]
  %s3 = sld [smem:[#allocation0]]
  $region26: #{tpu_custom_call.1} parent=0
    _
  %s5 = ssub.s32 1, %s3
  %s6 = scalar_select 0, %s5, %s3
  $region1: #{tpu_custom_call.1} parent=0
    #allocation2 [shape = 'u8[16384]{0}', space=vmem, size = 0x4000, scoped, tag = 'input window, operand 0, single buffered']
    #allocation3 [shape = 's32[1]{0}', space=sflag, size = 0x4, scoped, tag = 'scoped memory for tpu_custom_call.1']
    #allocation4 [shape = 's32[1]{0}', space=sflag, size = 0x4, scoped, tag = 'scoped memory for tpu_custom_call.1']
    #allocation5 [shape = 'u8[65536]{0}', space=vmem, size = 0x10000, scoped, tag = 'input window, operand 1, single buffered']
    #allocation6 [shape = 's32[1]{0}', space=sflag, size = 0x4, scoped, tag = 'scoped memory for tpu_custom_call.1']
    #allocation7 [shape = 'u8[16384]{0}', space=vmem, size = 0x4000, scoped, tag = 'output window, operand 0, single buffered']
    %7 = vsyncpa [#allocation3], 0
    %8 = vsyncpa [#allocation6], 0
    %9 = vsyncpa [#allocation4], 0
    // Predicated region
    $region2: #{tpu_custom_call.1} parent=1 // pred_check
      _
    $region3: #{tpu_custom_call.1} parent=1 // pred_check_branch
      %11 = sbr.rel (0) target = $region5
    $region4: #{tpu_custom_call.1} parent=1 // pred_region
      %s13 = ssub.s32 512, 512
      %14 = vsyncadd [#allocation3], %s13
      %s15 = sshll.u32 [#allocation2], 4
      %s16 = int_to_ptr.vmem [resolvable:$true] %s15
      %21 = dma.hbm_to_vmem [thread:$0]  %s0, 512, %s16, [#allocation3], 128, 128, 8
    $region5: #{tpu_custom_call.1} parent=1 // pred_fallthru
      _
    // Predicated region
    $region6: #{tpu_custom_call.1} parent=1 // pred_check
      _
    $region7: #{tpu_custom_call.1} parent=1 // pred_check_branch
      %23 = sbr.rel (0) target = $region9
    $region8: #{tpu_custom_call.1} parent=1 // pred_region
      %s25 = ssub.s32 2048, 2048
      %26 = vsyncadd [#allocation6], %s25
      %s27 = sshll.u32 [#allocation5], 4
      %s28 = int_to_ptr.vmem [resolvable:$true] %s27
      %33 = dma.hbm_to_vmem [thread:$0]  %s1, 2048, %s28, [#allocation6], 128, 128, 8
    $region9: #{tpu_custom_call.1} parent=1 // pred_fallthru
      _
    // Predicated region
    $region10: #{tpu_custom_call.1} parent=1 // pred_check
      _
    $region11: #{tpu_custom_call.1} parent=1 // pred_check_branch
      %35 = sbr.rel (0) target = $region13
    $region12: #{tpu_custom_call.1} parent=1 // pred_region
      %36 = dma.done [#allocation3], 512
    $region13: #{tpu_custom_call.1} parent=1 // pred_fallthru
      _
    // Predicated region
    $region14: #{tpu_custom_call.1} parent=1 // pred_check
      _
    $region15: #{tpu_custom_call.1} parent=1 // pred_check_branch
      %38 = sbr.rel (0) target = $region17
    $region16: #{tpu_custom_call.1} parent=1 // pred_region
      %39 = dma.done [#allocation6], 2048
    $region17: #{tpu_custom_call.1} parent=1 // pred_fallthru
      _
    %v40 = vld [vmem:[#allocation2] sm:$0xff]
    %v41 = vld [vmem:[#allocation2 + $0x8] sm:$0xff]
    %v42 = vld [vmem:[#allocation2 + $0x10] sm:$0xff]
    %v43 = vld [vmem:[#allocation2 + $0x18] sm:$0xff]
    %v44 = vld [vmem:[#allocation5] sm:$0xff]
    %v45 = vld [vmem:[#allocation5 + $0x8] sm:$0xff]
    %v46 = vld [vmem:[#allocation5 + $0x10] sm:$0xff]
    %v47 = vld [vmem:[#allocation5 + $0x18] sm:$0xff]
    %v48 = vld [vmem:[#allocation5 + $0x20] sm:$0xff]
    %v49 = vld [vmem:[#allocation5 + $0x28] sm:$0xff]
    %v50 = vld [vmem:[#allocation5 + $0x30] sm:$0xff]
    %v51 = vld [vmem:[#allocation5 + $0x38] sm:$0xff]
    %v52 = vld [vmem:[#allocation5 + $0x40] sm:$0xff]
    %v53 = vld [vmem:[#allocation5 + $0x48] sm:$0xff]
    %v54 = vld [vmem:[#allocation5 + $0x50] sm:$0xff]
    %v55 = vld [vmem:[#allocation5 + $0x58] sm:$0xff]
    %v56 = vld [vmem:[#allocation5 + $0x60] sm:$0xff]
    %v57 = vld [vmem:[#allocation5 + $0x68] sm:$0xff]
    %v58 = vld [vmem:[#allocation5 + $0x70] sm:$0xff]
    %v59 = vld [vmem:[#allocation5 + $0x78] sm:$0xff]
    %60 = vmatprep.subr.mxu0 0.0
    %61 = vmatpush1.msra.mxu0 %v59
    %62 = vmatprep.subr.mxu0 0.0
    %63 = vmatpush1.msra.mxu0 %v58
    %64 = vmatprep.subr.mxu0 0.0
    %65 = vmatpush1.msra.mxu0 %v57
    %66 = vmatprep.subr.mxu0 0.0
    %67 = vmatpush1.msra.mxu0 %v56
    %68 = vmatprep.subr.mxu0 0.0
    %69 = vmatpush1.msra.mxu0 %v55
    %70 = vmatprep.subr.mxu0 0.0
    %71 = vmatpush1.msra.mxu0 %v54
    %72 = vmatprep.subr.mxu0 0.0
    %73 = vmatpush1.msra.mxu0 %v53
    %74 = vmatprep.subr.mxu0 0.0
    %75 = vmatpush1.msra.mxu0 %v52
    %76 = vmatprep.subr.mxu0 0.0
    %77 = vmatpush1.msra.mxu0 %v51
    %78 = vmatprep.subr.mxu0 0.0
    %79 = vmatpush1.msra.mxu0 %v50
    %80 = vmatprep.subr.mxu0 0.0
    %81 = vmatpush1.msra.mxu0 %v49
    %82 = vmatprep.subr.mxu0 0.0
    %83 = vmatpush1.msra.mxu0 %v48
    %84 = vmatprep.subr.mxu0 0.0
    %85 = vmatpush1.msra.mxu0 %v47
    %86 = vmatprep.subr.mxu0 0.0
    %87 = vmatpush1.msra.mxu0 %v46
    %88 = vmatprep.subr.mxu0 0.0
    %89 = vmatpush1.msra.mxu0 %v45
    %90 = vmatprep.subr.mxu0 0.0
    %91 = vmatpush1.msra.mxu0 %v44
    %92 = vmatprep.subr.mxu0 0.0
    %93 = vmatpush2.msra.mxu0 0.0
    %94 = vmatprep.subr.mxu0 0.0
    %95 = vmatpush2.msra.mxu0 0.0
    %96 = vmatprep.subr.mxu0 0.0
    %97 = vmatpush2.msra.mxu0 0.0
    %98 = vmatprep.subr.mxu0 0.0
    %99 = vmatpush2.msra.mxu0 0.0
    %100 = vmatprep.subr.mxu0 0.0
    %101 = vmatpush2.msra.mxu0 0.0
    %102 = vmatprep.subr.mxu0 0.0
    %103 = vmatpush2.msra.mxu0 0.0
    %104 = vmatprep.subr.mxu0 0.0
    %105 = vmatpush2.msra.mxu0 0.0
    %106 = vmatprep.subr.mxu0 0.0
    %107 = vmatpush2.msra.mxu0 0.0
    %108 = vmatprep.subr.mxu0 0.0
    %109 = vmatpush2.msra.mxu0 0.0
    %110 = vmatprep.subr.mxu0 0.0
    %111 = vmatpush2.msra.mxu0 0.0
    %112 = vmatprep.subr.mxu0 0.0
    %113 = vmatpush2.msra.mxu0 0.0
    %114 = vmatprep.subr.mxu0 0.0
    %115 = vmatpush2.msra.mxu0 0.0
    %116 = vmatprep.subr.mxu0 0.0
    %117 = vmatpush2.msra.mxu0 0.0
    %118 = vmatprep.subr.mxu0 0.0
    %119 = vmatpush2.msra.mxu0 0.0
    %120 = vmatprep.subr.mxu0 0.0
    %121 = vmatpush2.msra.mxu0 0.0
    %122 = vmatprep.subr.mxu0 0.0
    %123 = vmatpush2.msra.mxu0 0.0
    %124 = vmatprep.mubr.f32.mxu0 0.0
    %125 = vmatmul.mubr.f32.gmra.mxu0 %v40
    %v126 = vpop.f32.mrf.mxu0
    %v127 = vadd.f32 0.0, %v126
    %v128 = vpop.f32.mrf.mxu0
    %129 = vmatprep.mubr.f32.mxu0 0.0
    %130 = vmatmul.mubr.f32.gmra.mxu0 %v41
    %v131 = vpop.f32.mrf.mxu0
    %v132 = vadd.f32 0.0, %v131
    %v133 = vpop.f32.mrf.mxu0
    %134 = vmatprep.mubr.f32.mxu0 0.0
    %135 = vmatmul.mubr.f32.gmra.mxu0 %v42
    %v136 = vpop.f32.mrf.mxu0
    %v137 = vadd.f32 0.0, %v136
    %v138 = vpop.f32.mrf.mxu0
    %139 = vmatprep.mubr.f32.mxu0 0.0
    %140 = vmatmul.mubr.f32.gmra.mxu0 %v43
    %v141 = vpop.f32.mrf.mxu0
    %v142 = vadd.f32 0.0, %v141
    %v143 = vpop.f32.mrf.mxu0
    %144 = vdwg.mxu0
    %147 = vrot.lane.b32.xlu0 %v127, 96
    %v148 = vpop.permute.xlu0 %147
    %149 = vrot.lane.b32.xlu0 %v132, 96
    %v150 = vpop.permute.xlu0 %149
    %vm151 = vcmask 261120
    %v152 = vsel %vm151, %v127, 0
    %v154 = vsel %vm151, %v132, 0
    %v156 = vsel %vm151, %v148, 0
    %v158 = vsel %vm151, %v150, 0
    %160 = vmatprep.subr.mxu0 0.0
    %161 = vmatpush1.xpose.msra.mxu0 0.0
    %162 = vmatprep.subr.mxu0 0.0
    %163 = vmatpush1.xpose.msra.mxu0 0.0
    %164 = vmatprep.subr.mxu0 0.0
    %165 = vmatpush1.xpose.msra.mxu0 0.0
    %166 = vmatprep.subr.mxu0 0.0
    %167 = vmatpush1.xpose.msra.mxu0 0.0
    %168 = vmatprep.subr.mxu0 0.0
    %169 = vmatpush1.xpose.msra.mxu0 0.0
    %170 = vmatprep.subr.mxu0 0.0
    %171 = vmatpush1.xpose.msra.mxu0 0.0
    %172 = vmatprep.subr.mxu0 0.0
    %173 = vmatpush1.xpose.msra.mxu0 0.0
    %174 = vmatprep.subr.mxu0 0.0
    %175 = vmatpush1.xpose.msra.mxu0 0.0
    %176 = vmatprep.subr.mxu0 0.0
    %177 = vmatpush1.xpose.msra.mxu0 0.0
    %178 = vmatprep.subr.mxu0 0.0
    %179 = vmatpush1.xpose.msra.mxu0 0.0
    %180 = vmatprep.subr.mxu0 0.0
    %181 = vmatpush1.xpose.msra.mxu0 0.0
    %182 = vmatprep.subr.mxu0 0.0
    %183 = vmatpush1.xpose.msra.mxu0 0.0
    %184 = vmatprep.subr.mxu0 0.0
    %185 = vmatpush1.xpose.msra.mxu0 0.0
    %186 = vmatprep.subr.mxu0 0.0
    %187 = vmatpush1.xpose.msra.mxu0 0.0
    %188 = vmatprep.subr.mxu0 0.0
    %189 = vmatpush1.xpose.msra.mxu0 %v158
    %190 = vmatprep.subr.mxu0 0.0
    %191 = vmatpush1.xpose.msra.mxu0 %v156
    %192 = vmatprep.subr.mxu0 0.0
    %193 = vmatpush2.xpose.msra.mxu0 0.0
    %194 = vmatprep.subr.mxu0 0.0
    %195 = vmatpush2.xpose.msra.mxu0 0.0
    %196 = vmatprep.subr.mxu0 0.0
    %197 = vmatpush2.xpose.msra.mxu0 0.0
    %198 = vmatprep.subr.mxu0 0.0
    %199 = vmatpush2.xpose.msra.mxu0 0.0
    %200 = vmatprep.subr.mxu0 0.0
    %201 = vmatpush2.xpose.msra.mxu0 0.0
    %202 = vmatprep.subr.mxu0 0.0
    %203 = vmatpush2.xpose.msra.mxu0 0.0
    %204 = vmatprep.subr.mxu0 0.0
    %205 = vmatpush2.xpose.msra.mxu0 0.0
    %206 = vmatprep.subr.mxu0 0.0
    %207 = vmatpush2.xpose.msra.mxu0 0.0
    %208 = vmatprep.subr.mxu0 0.0
    %209 = vmatpush2.xpose.msra.mxu0 0.0
    %210 = vmatprep.subr.mxu0 0.0
    %211 = vmatpush2.xpose.msra.mxu0 0.0
    %212 = vmatprep.subr.mxu0 0.0
    %213 = vmatpush2.xpose.msra.mxu0 0.0
    %214 = vmatprep.subr.mxu0 0.0
    %215 = vmatpush2.xpose.msra.mxu0 0.0
    %216 = vmatprep.subr.mxu0 0.0
    %217 = vmatpush2.xpose.msra.mxu0 0.0
    %218 = vmatprep.subr.mxu0 0.0
    %219 = vmatpush2.xpose.msra.mxu0 0.0
    %220 = vmatprep.subr.mxu0 0.0
    %221 = vmatpush2.xpose.msra.mxu0 0.0
    %222 = vmatprep.subr.mxu0 0.0
    %223 = vmatpush2.xpose.msra.mxu0 0.0
    %224 = vmatprep.mubr.f32.mxu0 0.0
    %225 = vmatmul.mubr.f32.gmra.mxu0 %v152
    %v226 = vpop.f32.mrf.mxu0
    %v227 = vadd.f32 0.0, %v226
    %v228 = vpop.f32.mrf.mxu0
    %229 = vmatprep.mubr.f32.mxu0 0.0
    %230 = vmatmul.mubr.f32.gmra.mxu0 %v154
    %v231 = vpop.f32.mrf.mxu0
    %v232 = vadd.f32 0.0, %v231
    %v233 = vpop.f32.mrf.mxu0
    %234 = vdwg.mxu0
    %237 = vrot.lane.b32.xlu0 %v137, 96
    %v238 = vpop.permute.xlu0 %237
    %239 = vrot.lane.b32.xlu0 %v142, 96
    %v240 = vpop.permute.xlu0 %239
    %v241 = vsel %vm151, %v137, 0
    %v243 = vsel %vm151, %v142, 0
    %v245 = vsel %vm151, %v238, 0
    %v247 = vsel %vm151, %v240, 0
    %249 = vmatprep.subr.mxu0 0.0
    %250 = vmatpush1.xpose.msra.mxu0 0.0
    %251 = vmatprep.subr.mxu0 0.0
    %252 = vmatpush1.xpose.msra.mxu0 0.0
    %253 = vmatprep.subr.mxu0 0.0
    %254 = vmatpush1.xpose.msra.mxu0 0.0
    %255 = vmatprep.subr.mxu0 0.0
    %256 = vmatpush1.xpose.msra.mxu0 0.0
    %257 = vmatprep.subr.mxu0 0.0
    %258 = vmatpush1.xpose.msra.mxu0 0.0
    %259 = vmatprep.subr.mxu0 0.0
    %260 = vmatpush1.xpose.msra.mxu0 0.0
    %261 = vmatprep.subr.mxu0 0.0
    %262 = vmatpush1.xpose.msra.mxu0 0.0
    %263 = vmatprep.subr.mxu0 0.0
    %264 = vmatpush1.xpose.msra.mxu0 0.0
    %265 = vmatprep.subr.mxu0 0.0
    %266 = vmatpush1.xpose.msra.mxu0 0.0
    %267 = vmatprep.subr.mxu0 0.0
    %268 = vmatpush1.xpose.msra.mxu0 0.0
    %269 = vmatprep.subr.mxu0 0.0
    %270 = vmatpush1.xpose.msra.mxu0 0.0
    %271 = vmatprep.subr.mxu0 0.0
    %272 = vmatpush1.xpose.msra.mxu0 0.0
    %273 = vmatprep.subr.mxu0 0.0
    %274 = vmatpush1.xpose.msra.mxu0 0.0
    %275 = vmatprep.subr.mxu0 0.0
    %276 = vmatpush1.xpose.msra.mxu0 0.0
    %277 = vmatprep.subr.mxu0 0.0
    %278 = vmatpush1.xpose.msra.mxu0 %v247
    %279 = vmatprep.subr.mxu0 0.0
    %280 = vmatpush1.xpose.msra.mxu0 %v245
    %281 = vmatprep.subr.mxu0 0.0
    %282 = vmatpush2.xpose.msra.mxu0 0.0
    %283 = vmatprep.subr.mxu0 0.0
    %284 = vmatpush2.xpose.msra.mxu0 0.0
    %285 = vmatprep.subr.mxu0 0.0
    %286 = vmatpush2.xpose.msra.mxu0 0.0
    %287 = vmatprep.subr.mxu0 0.0
    %288 = vmatpush2.xpose.msra.mxu0 0.0
    %289 = vmatprep.subr.mxu0 0.0
    %290 = vmatpush2.xpose.msra.mxu0 0.0
    %291 = vmatprep.subr.mxu0 0.0
    %292 = vmatpush2.xpose.msra.mxu0 0.0
    %293 = vmatprep.subr.mxu0 0.0
    %294 = vmatpush2.xpose.msra.mxu0 0.0
    %295 = vmatprep.subr.mxu0 0.0
    %296 = vmatpush2.xpose.msra.mxu0 0.0
    %297 = vmatprep.subr.mxu0 0.0
    %298 = vmatpush2.xpose.msra.mxu0 0.0
    %299 = vmatprep.subr.mxu0 0.0
    %300 = vmatpush2.xpose.msra.mxu0 0.0
    %301 = vmatprep.subr.mxu0 0.0
    %302 = vmatpush2.xpose.msra.mxu0 0.0
    %303 = vmatprep.subr.mxu0 0.0
    %304 = vmatpush2.xpose.msra.mxu0 0.0
    %305 = vmatprep.subr.mxu0 0.0
    %306 = vmatpush2.xpose.msra.mxu0 0.0
    %307 = vmatprep.subr.mxu0 0.0
    %308 = vmatpush2.xpose.msra.mxu0 0.0
    %309 = vmatprep.subr.mxu0 0.0
    %310 = vmatpush2.xpose.msra.mxu0 0.0
    %311 = vmatprep.subr.mxu0 0.0
    %312 = vmatpush2.xpose.msra.mxu0 0.0
    %313 = vmatprep.mubr.f32.mxu0 0.0
    %314 = vmatmul.mubr.f32.gmra.mxu0 %v241
    %v315 = vpop.f32.mrf.mxu0
    %v316 = vadd.f32 0.0, %v315
    %v317 = vpop.f32.mrf.mxu0
    %318 = vmatprep.mubr.f32.mxu0 0.0
    %319 = vmatmul.mubr.f32.gmra.mxu0 %v243
    %v320 = vpop.f32.mrf.mxu0
    %v321 = vadd.f32 0.0, %v320
    %v322 = vpop.f32.mrf.mxu0
    %323 = vdwg.mxu0
    %v324 = vmul.f32 %v227, 0.17677669
    %v325 = vmul.f32 %v232, 0.17677669
    %v326 = vmul.f32 %v316, 0.17677669
    %v327 = vmul.f32 %v321, 0.17677669
    %v328 = vlaneseq
    %v329 = vshrl.u32 %v328, 7
    %v330 = vadd.s32 %v329, 8
    %v331 = vlaneseq
    %v332 = vand.u32 %v331, 127
    %vm333 = vcmp.ge.s32.totalorder %v329, %v332
    %vm334 = vcmp.ge.s32.totalorder %v330, %v332
    %v335 = vsel %vm333, 1, 0
    %v336 = vsel %vm334, 1, 0
    %vm337 = vcmp.eq.s32.totalorder %v335, 1
    %vm338 = vcmp.eq.s32.totalorder %v336, 1
    %v339 = vsel %vm337, %v324, -inf
    %v340 = vsel %vm338, %v325, -inf
    %v341 = vsel %vm337, %v326, -inf
    %v342 = vsel %vm338, %v327, -inf
    %vm343 = vcmask 130048
    %v344 = vsel %vm343, %v339, -inf
    %345 = vmax.xlane.f32.xlu0 %v344
    %v346 = vpop.xlane.xlu0 %345
    %v347 = vsel %vm343, %v340, -inf
    %348 = vmax.xlane.f32.xlu0 %v347
    %v349 = vpop.xlane.xlu0 %348
    %v350 = vsel %vm343, %v341, -inf
    %351 = vmax.xlane.f32.xlu0 %v350
    %v352 = vpop.xlane.xlu0 %351
    %v353 = vsel %vm343, %v342, -inf
    %354 = vmax.xlane.f32.xlu0 %v353
    %v355 = vpop.xlane.xlu0 %354
    %v356 = vsub.f32 %v339, %v346
    %v357 = vsub.f32 %v340, %v349
    %v358 = vsub.f32 %v341, %v352
    %v359 = vsub.f32 %v342, %v355
    %v360 = vmul.f32 %v356, 1.442695
    %v361 = vpow.pop %v360
    %v362 = vmul.f32 %v357, 1.442695
    %v363 = vpow.pop %v362
    %v364 = vmul.f32 %v358, 1.442695
    %v365 = vpow.pop %v364
    %v366 = vmul.f32 %v359, 1.442695
    %v367 = vpow.pop %v366
    %v368 = vsel %vm343, %v361, 0.0
    %369 = vadd.xlane.f32.xlu0 %v368
    %v370 = vpop.xlane.xlu0 %369
    %v371 = vsel %vm343, %v363, 0.0
    %372 = vadd.xlane.f32.xlu0 %v371
    %v373 = vpop.xlane.xlu0 %372
    %v374 = vsel %vm343, %v365, 0.0
    %375 = vadd.xlane.f32.xlu0 %v374
    %v376 = vpop.xlane.xlu0 %375
    %v377 = vsel %vm343, %v367, 0.0
    %378 = vadd.xlane.f32.xlu0 %v377
    %v379 = vpop.xlane.xlu0 %378
    %v380 = vrcp.pop %v370
    %v381 = vrcp.pop %v373
    %v382 = vrcp.pop %v376
    %v383 = vrcp.pop %v379
    %v384 = vmul.f32 %v361, %v380
    %v385 = vmul.f32 %v363, %v381
    %v386 = vmul.f32 %v365, %v382
    %v387 = vmul.f32 %v367, %v383
    %388 = vrot.lane.b32.xlu0 %v127, 64
    %v389 = vpop.permute.xlu0 %388
    %390 = vrot.lane.b32.xlu0 %v132, 64
    %v391 = vpop.permute.xlu0 %390
    %v395 = vsel %vm343, %v384, 0
    %v398 = vsel %vm343, %v385, 0
    %400 = vmatprep.subr.mxu0 0.0
    %401 = vmatpush1.msra.mxu0 0.0
    %402 = vmatprep.subr.mxu0 0.0
    %403 = vmatpush1.msra.mxu0 0.0
    %404 = vmatprep.subr.mxu0 0.0
    %405 = vmatpush1.msra.mxu0 0.0
    %406 = vmatprep.subr.mxu0 0.0
    %407 = vmatpush1.msra.mxu0 0.0
    %408 = vmatprep.subr.mxu0 0.0
    %409 = vmatpush1.msra.mxu0 0.0
    %410 = vmatprep.subr.mxu0 0.0
    %411 = vmatpush1.msra.mxu0 0.0
    %412 = vmatprep.subr.mxu0 0.0
    %413 = vmatpush1.msra.mxu0 0.0
    %414 = vmatprep.subr.mxu0 0.0
    %415 = vmatpush1.msra.mxu0 0.0
    %416 = vmatprep.subr.mxu0 0.0
    %417 = vmatpush1.msra.mxu0 0.0
    %418 = vmatprep.subr.mxu0 0.0
    %419 = vmatpush1.msra.mxu0 0.0
    %420 = vmatprep.subr.mxu0 0.0
    %421 = vmatpush1.msra.mxu0 0.0
    %422 = vmatprep.subr.mxu0 0.0
    %423 = vmatpush1.msra.mxu0 0.0
    %424 = vmatprep.subr.mxu0 0.0
    %425 = vmatpush1.msra.mxu0 0.0
    %426 = vmatprep.subr.mxu0 0.0
    %427 = vmatpush1.msra.mxu0 0.0
    %428 = vmatprep.subr.mxu0 0.0
    %429 = vmatpush1.msra.mxu0 %v391
    %430 = vmatprep.subr.mxu0 0.0
    %431 = vmatpush1.msra.mxu0 %v389
    %432 = vmatprep.subr.mxu0 0.0
    %433 = vmatpush2.msra.mxu0 0.0
    %434 = vmatprep.subr.mxu0 0.0
    %435 = vmatpush2.msra.mxu0 0.0
    %436 = vmatprep.subr.mxu0 0.0
    %437 = vmatpush2.msra.mxu0 0.0
    %438 = vmatprep.subr.mxu0 0.0
    %439 = vmatpush2.msra.mxu0 0.0
    %440 = vmatprep.subr.mxu0 0.0
    %441 = vmatpush2.msra.mxu0 0.0
    %442 = vmatprep.subr.mxu0 0.0
    %443 = vmatpush2.msra.mxu0 0.0
    %444 = vmatprep.subr.mxu0 0.0
    %445 = vmatpush2.msra.mxu0 0.0
    %446 = vmatprep.subr.mxu0 0.0
    %447 = vmatpush2.msra.mxu0 0.0
    %448 = vmatprep.subr.mxu0 0.0
    %449 = vmatpush2.msra.mxu0 0.0
    %450 = vmatprep.subr.mxu0 0.0
    %451 = vmatpush2.msra.mxu0 0.0
    %452 = vmatprep.subr.mxu0 0.0
    %453 = vmatpush2.msra.mxu0 0.0
    %454 = vmatprep.subr.mxu0 0.0
    %455 = vmatpush2.msra.mxu0 0.0
    %456 = vmatprep.subr.mxu0 0.0
    %457 = vmatpush2.msra.mxu0 0.0
    %458 = vmatprep.subr.mxu0 0.0
    %459 = vmatpush2.msra.mxu0 0.0
    %460 = vmatprep.subr.mxu0 0.0
    %461 = vmatpush2.msra.mxu0 0.0
    %462 = vmatprep.subr.mxu0 0.0
    %463 = vmatpush2.msra.mxu0 0.0
    %464 = vmatprep.mubr.f32.mxu0 0.0
    %465 = vmatmul.mubr.f32.gmra.mxu0 %v395
    %v466 = vpop.f32.mrf.mxu0
    %v467 = vadd.f32 0.0, %v466
    %v468 = vpop.f32.mrf.mxu0
    %469 = vmatprep.mubr.f32.mxu0 0.0
    %470 = vmatmul.mubr.f32.gmra.mxu0 %v398
    %v471 = vpop.f32.mrf.mxu0
    %v472 = vadd.f32 0.0, %v471
    %v473 = vpop.f32.mrf.mxu0
    %474 = vdwg.mxu0
    %475 = vrot.lane.b32.xlu0 %v137, 64
    %v476 = vpop.permute.xlu0 %475
    %477 = vrot.lane.b32.xlu0 %v142, 64
    %v478 = vpop.permute.xlu0 %477
    %v482 = vsel %vm343, %v386, 0
    %v485 = vsel %vm343, %v387, 0
    %487 = vmatprep.subr.mxu0 0.0
    %488 = vmatpush1.msra.mxu0 0.0
    %489 = vmatprep.subr.mxu0 0.0
    %490 = vmatpush1.msra.mxu0 0.0
    %491 = vmatprep.subr.mxu0 0.0
    %492 = vmatpush1.msra.mxu0 0.0
    %493 = vmatprep.subr.mxu0 0.0
    %494 = vmatpush1.msra.mxu0 0.0
    %495 = vmatprep.subr.mxu0 0.0
    %496 = vmatpush1.msra.mxu0 0.0
    %497 = vmatprep.subr.mxu0 0.0
    %498 = vmatpush1.msra.mxu0 0.0
    %499 = vmatprep.subr.mxu0 0.0
    %500 = vmatpush1.msra.mxu0 0.0
    %501 = vmatprep.subr.mxu0 0.0
    %502 = vmatpush1.msra.mxu0 0.0
    %503 = vmatprep.subr.mxu0 0.0
    %504 = vmatpush1.msra.mxu0 0.0
    %505 = vmatprep.subr.mxu0 0.0
    %506 = vmatpush1.msra.mxu0 0.0
    %507 = vmatprep.subr.mxu0 0.0
    %508 = vmatpush1.msra.mxu0 0.0
    %509 = vmatprep.subr.mxu0 0.0
    %510 = vmatpush1.msra.mxu0 0.0
    %511 = vmatprep.subr.mxu0 0.0
    %512 = vmatpush1.msra.mxu0 0.0
    %513 = vmatprep.subr.mxu0 0.0
    %514 = vmatpush1.msra.mxu0 0.0
    %515 = vmatprep.subr.mxu0 0.0
    %516 = vmatpush1.msra.mxu0 %v478
    %517 = vmatprep.subr.mxu0 0.0
    %518 = vmatpush1.msra.mxu0 %v476
    %519 = vmatprep.subr.mxu0 0.0
    %520 = vmatpush2.msra.mxu0 0.0
    %521 = vmatprep.subr.mxu0 0.0
    %522 = vmatpush2.msra.mxu0 0.0
    %523 = vmatprep.subr.mxu0 0.0
    %524 = vmatpush2.msra.mxu0 0.0
    %525 = vmatprep.subr.mxu0 0.0
    %526 = vmatpush2.msra.mxu0 0.0
    %527 = vmatprep.subr.mxu0 0.0
    %528 = vmatpush2.msra.mxu0 0.0
    %529 = vmatprep.subr.mxu0 0.0
    %530 = vmatpush2.msra.mxu0 0.0
    %531 = vmatprep.subr.mxu0 0.0
    %532 = vmatpush2.msra.mxu0 0.0
    %533 = vmatprep.subr.mxu0 0.0
    %534 = vmatpush2.msra.mxu0 0.0
    %535 = vmatprep.subr.mxu0 0.0
    %536 = vmatpush2.msra.mxu0 0.0
    %537 = vmatprep.subr.mxu0 0.0
    %538 = vmatpush2.msra.mxu0 0.0
    %539 = vmatprep.subr.mxu0 0.0
    %540 = vmatpush2.msra.mxu0 0.0
    %541 = vmatprep.subr.mxu0 0.0
    %542 = vmatpush2.msra.mxu0 0.0
    %543 = vmatprep.subr.mxu0 0.0
    %544 = vmatpush2.msra.mxu0 0.0
    %545 = vmatprep.subr.mxu0 0.0
    %546 = vmatpush2.msra.mxu0 0.0
    %547 = vmatprep.subr.mxu0 0.0
    %548 = vmatpush2.msra.mxu0 0.0
    %549 = vmatprep.subr.mxu0 0.0
    %550 = vmatpush2.msra.mxu0 0.0
    %551 = vmatprep.mubr.f32.mxu0 0.0
    %552 = vmatmul.mubr.f32.gmra.mxu0 %v482
    %v553 = vpop.f32.mrf.mxu0
    %v554 = vadd.f32 0.0, %v553
    %v555 = vpop.f32.mrf.mxu0
    %556 = vmatprep.mubr.f32.mxu0 0.0
    %557 = vmatmul.mubr.f32.gmra.mxu0 %v485
    %v558 = vpop.f32.mrf.mxu0
    %v559 = vadd.f32 0.0, %v558
    %v560 = vpop.f32.mrf.mxu0
    %561 = vdwg.mxu0
    %562 = vst.msk [vmem:[#allocation7] sm:$0xff] %vm151, %v467
    %563 = vst.msk [vmem:[#allocation7 + $0x8] sm:$0xff] %vm151, %v472
    %564 = vst.msk [vmem:[#allocation7 + $0x10] sm:$0xff] %vm151, %v554
    %565 = vst.msk [vmem:[#allocation7 + $0x18] sm:$0xff] %vm151, %v559
    // Predicated region
    $region18: #{tpu_custom_call.1} parent=1 // pred_check
      _
    $region19: #{tpu_custom_call.1} parent=1 // pred_check_branch
      %567 = sbr.rel (0) target = $region21
    $region20: #{tpu_custom_call.1} parent=1 // pred_region
      %s569 = ssub.s32 512, 512
      %570 = vsyncadd [#allocation4], %s569
      %s571 = sshll.u32 [#allocation7], 4
      %s572 = int_to_ptr.vmem [resolvable:$true] %s571
      %577 = dma.vmem_to_hbm [thread:$0]  %s572, 512, %s2, [#allocation4], 128, 128, 8
    $region21: #{tpu_custom_call.1} parent=1 // pred_fallthru
      _
    // Predicated region
    $region22: #{tpu_custom_call.1} parent=1 // pred_check
      _
    $region23: #{tpu_custom_call.1} parent=1 // pred_check_branch
      %579 = sbr.rel (0) target = $region25
    $region24: #{tpu_custom_call.1} parent=1 // pred_region
      %580 = dma.done [#allocation4], 512
    $region25: #{tpu_custom_call.1} parent=1 // pred_fallthru
      _
    %581 = vsyncpa [#allocation3], 1
    %582 = vsyncpa [#allocation6], 1
    %583 = vsyncpa [#allocation4], 1

</llo_original>
